<compile_context>
chip_gen: v7x
topology: tpu7x:2x2x1
jax: 0.10.0
libtpu: 0.0.40
codegen_flags: <defaults>
</compile_context>

<pallas_src>
import functools

import jax
import jax.numpy as jnp
from jax.experimental import pallas as pl
from jax.experimental.pallas import tpu as pltpu


# ---------------------------------------------------------------------------
# Kernel
# ---------------------------------------------------------------------------
def _rmsnorm_kernel(x_ref, w_ref, o_ref, *, eps):
    # x_ref: (row_tile, H) tile of rows; w_ref: (1, H) weight in the I/O dtype
    # (resident across all grid steps via the (0,0) index_map).
    x = x_ref[...].astype(jnp.float32)
    var = jnp.mean(x * x, axis=-1, keepdims=True)     # Qwen2RMSNorm variance
    inv = jax.lax.rsqrt(var + eps)
    # Match the PyTorch order exactly: cast the normalized activations back to
    # the input dtype BEFORE multiplying by weight.
    normed = (x * inv).astype(o_ref.dtype)
    o_ref[...] = w_ref[...] * normed


# ---------------------------------------------------------------------------
# Tile-size / VMEM heuristics
# ---------------------------------------------------------------------------
# Measured tiled-streaming data hits ~85% of HBM roofline around 1-4 MiB tiles;
# bigger tiles add VMEM pressure / pipeline ramp with no bandwidth gain.
_TARGET_TILE_BYTES = 2 << 20


def _vmem_capacity_bytes():
    try:
        return int(pltpu.get_tpu_info().vmem_capacity_bytes)
    except Exception:
        # Conservative fallback: v7x has 64 MiB per TensorCore.
        return 64 << 20


def _sublane_multiple(dtype):
    # f32 -> 8, bf16 -> 16, int8/fp8 -> 32 (sub-32-bit dtypes pack sublanes).
    return max(8, 32 // jnp.dtype(dtype).itemsize)


def _pick_row_tile(n_rows, hidden, dtype, vmem_cap):
    mult = _sublane_multiple(dtype)
    itemsize = jnp.dtype(dtype).itemsize
    row_bytes = hidden * itemsize

    # Live VMEM per input-tile byte at peak:
    #   2x input (double-buffered) + 2x output (same dtype)        -> 4
    #   f32 copy of the tile held across the mean(x*x) reduce plus
    #   one extra f32-sized temporary for (x * inv)                -> 2 * (4/itemsize)
    per_byte_factor = 4.0 + 2.0 * (4.0 / itemsize)
    vmem_tile_cap = int((vmem_cap * 0.5) / per_byte_factor)

    per_tile_cap = min(_TARGET_TILE_BYTES, vmem_tile_cap)
    per_tile_cap = max(per_tile_cap, mult * row_bytes)   # at least one sublane group

    rt = (per_tile_cap // row_bytes // mult) * mult
    rt = max(rt, mult)

    # Never bigger than the (rounded-up) total row count.
    rt = min(rt, pl.cdiv(n_rows, mult) * mult)

    # v7x load balance: when there is more than one tile, prefer an even number
    # of grid steps so the two TensorCores finish together (near-neutral on
    # single-TC parts).  Best-effort: stays a multiple of the sublane group.
    n_tiles = pl.cdiv(n_rows, rt)
    if n_tiles > 1 and n_tiles % 2 == 1:
        n_tiles += 1
        rt = max(mult, pl.cdiv(pl.cdiv(n_rows, n_tiles), mult) * mult)
    return int(rt)


# ---------------------------------------------------------------------------
# Wrapper
# ---------------------------------------------------------------------------
def rmsnorm_pallas(x, weight, eps=1e-6, row_tile=None):
    """RMSNorm over the last axis of x (any leading dims); weight shape (H,)."""
    orig_shape = x.shape
    H = orig_shape[-1]
    x2d = x.reshape(-1, H)
    R = x2d.shape[0]

    vmem_cap = _vmem_capacity_bytes()
    if row_tile is None:
        row_tile = _pick_row_tile(R, H, x.dtype, vmem_cap)
    grid = pl.cdiv(R, row_tile)  # ragged last block handled by masked writeback

    # Cast weight once in the wrapper to the I/O dtype (PyTorch multiplies the
    # already-downcast activations by self.weight; weight and activations share
    # the model dtype in practice).  The (0,0) index_map keeps it VMEM-resident.
    w2d = weight.astype(x.dtype).reshape(1, H)

    # VMEM budget: double-buffered in/out tiles + f32 intermediates + weight + slack.
    itemsize = jnp.dtype(x.dtype).itemsize
    tile_bytes = row_tile * H * itemsize
    f32_tile_bytes = row_tile * H * 4
    vmem_limit = 4 * tile_bytes + 2 * f32_tile_bytes + 2 * H * 4 + (2 << 20)
    vmem_limit = int(min(max(vmem_limit, 8 << 20), int(vmem_cap * 0.9)))

    out = pl.pallas_call(
        functools.partial(_rmsnorm_kernel, eps=eps),
        out_shape=jax.ShapeDtypeStruct((R, H), x.dtype),
        grid_spec=pltpu.PrefetchScalarGridSpec(
            num_scalar_prefetch=0,
            grid=(grid,),
            in_specs=[
                pl.BlockSpec((row_tile, H), lambda i: (i, 0)),
                pl.BlockSpec((1, H), lambda i: (0, 0)),
            ],
            out_specs=pl.BlockSpec((row_tile, H), lambda i: (i, 0)),
        ),
        compiler_params=pltpu.CompilerParams(
            dimension_semantics=("parallel",),
            vmem_limit_bytes=vmem_limit,
        ),
    )(x2d, w2d)
    return out.reshape(orig_shape)


def norm_pipe_layer_forward(inputs, weight, eps=1e-6):
    """Mirrors NormPipeLayer.forward: normalize hidden_states, pass the rest through."""
    hidden_states, attention_mask, position_ids, labels = inputs
    hidden_states = rmsnorm_pallas(hidden_states, weight, eps=eps)
    return (hidden_states, attention_mask, position_ids, labels)


# ---------------------------------------------------------------------------
# Pure-JAX reference (same cast order as PyTorch Qwen2RMSNorm)
# ---------------------------------------------------------------------------
def _rmsnorm_ref(x, weight, eps=1e-6):
    xf = x.astype(jnp.float32)
    var = jnp.mean(xf * xf, axis=-1, keepdims=True)
    normed = (xf * jax.lax.rsqrt(var + eps)).astype(x.dtype)
    return weight.astype(x.dtype) * normed


if __name__ == "__main__":
    eps = 1e-6
    key = jax.random.PRNGKey(0)
    k_h, k_l, k_h2 = jax.random.split(key, 3)

    # ---- f32 check with a ragged row count (R = 18, not divisible by 8) ----
    B, S, H = 2, 9, 256
    hidden_states = jax.random.normal(k_h, (B, S, H), dtype=jnp.float32)
    attention_mask = jnp.ones((B, S), dtype=jnp.int32)
    position_ids = jnp.broadcast_to(jnp.arange(S, dtype=jnp.int32), (B, S))
    labels = jax.random.randint(k_l, (B, S), 0, 100, dtype=jnp.int32)

    # Qwen2RMSNorm initializes weight to ones; perturb deterministically so the
    # elementwise scale is actually exercised.
    weight = jnp.ones((H,), dtype=jnp.float32) + 0.01 * jnp.arange(H, dtype=jnp.float32) / H

    inputs = (hidden_states, attention_mask, position_ids, labels)
    out_hs, out_mask, out_pos, out_labels = norm_pipe_layer_forward(inputs, weight, eps=eps)
    jax.block_until_ready(out_hs)

    ref = _rmsnorm_ref(hidden_states, weight, eps=eps)
    assert jnp.allclose(out_hs, ref, atol=1e-5, rtol=1e-5), "f32 mismatch vs reference"
    assert out_mask is attention_mask and out_pos is position_ids and out_labels is labels

    # ---- bf16 check (exercises dtype-aware sublane tiling: multiple of 16) ----
    hs_bf16 = jax.random.normal(k_h2, (4, 16, H), dtype=jnp.float32).astype(jnp.bfloat16)
    out_bf16 = rmsnorm_pallas(hs_bf16, weight, eps=eps)
    jax.block_until_ready(out_bf16)
    ref_bf16 = _rmsnorm_ref(hs_bf16, weight, eps=eps)
    assert jnp.allclose(out_bf16.astype(jnp.float32), ref_bf16.astype(jnp.float32),
                        atol=2e-2, rtol=2e-2), "bf16 mismatch vs reference"

    # ---- explicit multi-tile path (small row_tile forces a >1, even-ish grid) ----
    hs_mt = jax.random.normal(k_h, (4, 32, H), dtype=jnp.float32)
    out_mt = rmsnorm_pallas(hs_mt, weight, eps=eps, row_tile=32)  # grid = 4 steps
    jax.block_until_ready(out_mt)
    assert jnp.allclose(out_mt, _rmsnorm_ref(hs_mt, weight, eps=eps),
                        atol=1e-5, rtol=1e-5), "multi-tile mismatch vs reference"

    print("KERNEL_OK")
</pallas_src>

<mosaic_0001>
module attributes {stable_mosaic.version = 11 : i64} {
  func.func @_rmsnorm_kernel(%arg0: i32, %arg1: memref<24x256xf32, #tpu.memory_space<vmem>>, %arg2: memref<1x256xf32, #tpu.memory_space<vmem>>, %arg3: memref<24x256xf32, #tpu.memory_space<vmem>>) attributes {dimension_semantics = [#tpu.dimension_semantics<parallel>], iteration_bounds = array<i64: 1>, scalar_prefetch = 0 : i64, scratch_operands = 0 : i64, tpu.core_type = #tpu.core_type<tc>, window_params = [{transform_indices = @transform_0, window_bounds = array<i64: 24, 256>}, {pipeline_mode = #tpu.pipeline_mode<synchronous>, transform_indices = @transform_1, window_bounds = array<i64: 1, 256>}, {transform_indices = @transform_2, window_bounds = array<i64: 24, 256>}]} {
    %c0 = arith.constant 0 : index
    %c0_0 = arith.constant 0 : index
    %0 = vector.load %arg1[%c0, %c0_0] : memref<24x256xf32, #tpu.memory_space<vmem>>, vector<24x256xf32>
    %1 = arith.mulf %0, %0 : vector<24x256xf32>
    %cst = arith.constant dense<0.000000e+00> : vector<24xf32>
    %2 = vector.multi_reduction <add>, %1, %cst [1] : vector<24x256xf32> to vector<24xf32>
    %3 = vector.shape_cast %2 : vector<24xf32> to vector<24x1xf32>
    %cst_1 = arith.constant 2.560000e+02 : f32
    %4 = vector.broadcast %cst_1 : f32 to vector<24x1xf32>
    %5 = arith.divf %3, %4 : vector<24x1xf32>
    %cst_2 = arith.constant 9.99999997E-7 : f32
    %6 = vector.broadcast %cst_2 : f32 to vector<24x1xf32>
    %7 = arith.addf %5, %6 : vector<24x1xf32>
    %8 = math.rsqrt %7 : vector<24x1xf32>
    %9 = vector.broadcast %8 : vector<24x1xf32> to vector<24x256xf32>
    %10 = arith.mulf %0, %9 : vector<24x256xf32>
    %c0_3 = arith.constant 0 : index
    %c0_4 = arith.constant 0 : index
    %11 = vector.load %arg2[%c0_3, %c0_4] : memref<1x256xf32, #tpu.memory_space<vmem>>, vector<1x256xf32>
    %12 = vector.broadcast %11 : vector<1x256xf32> to vector<24x256xf32>
    %13 = arith.mulf %12, %10 : vector<24x256xf32>
    %c0_5 = arith.constant 0 : index
    %c0_6 = arith.constant 0 : index
    %14 = vector.load %arg3[%c0_5, %c0_6] : memref<24x256xf32, #tpu.memory_space<vmem>>, vector<24x256xf32>
    tpu.vector_store %arg3[%c0_5, %c0_6], %13 {strides = array<i32>} : memref<24x256xf32, #tpu.memory_space<vmem>>, vector<24x256xf32>,
    return
  }
  func.func @transform_0(%arg0: i32) -> (i32, i32) {
    %c0_i32 = arith.constant 0 : i32
    %c0_i32_0 = arith.constant 0 : i32
    return %arg0, %c0_i32 : i32, i32
  }
  func.func @transform_1(%arg0: i32) -> (i32, i32) {
    %c0_i32 = arith.constant 0 : i32
    %c0_i32_0 = arith.constant 0 : i32
    %c0_i32_1 = arith.constant 0 : i32
    return %c0_i32, %c0_i32_0 : i32, i32
  }
  func.func @transform_2(%arg0: i32) -> (i32, i32) {
    %c0_i32 = arith.constant 0 : i32
    %c0_i32_0 = arith.constant 0 : i32
    return %arg0, %c0_i32 : i32, i32
  }
}

</mosaic_0001>

<llo_original>
// kernel: tpu_custom_call.1
$region0: #{tpu_custom_call.1}
  #allocation0 [shape = 'u32[]', space=smem, size = 0x4, offset = 0x4, fixed_abs, tag = 'smem constant byte address 0x4 - core index']
  #allocation1 [shape = 'u32[144,128]{1,0:T(1,128)}', space=vmem, size = 0x12000, scoped, tag = 'internal scratch']
  %s0 = inlined_call_operand.hbm [shape: f32[18,256], index: 0, kind: input, shape index: {}]
  %s1 = inlined_call_operand.vmem [shape: f32[1,256], index: 1, kind: input, shape index: {}]
  %s2 = inlined_call_operand.hbm [shape: f32[18,256], index: 2, kind: output, shape index: {}]
  %s3 = sld [smem:[#allocation0]]
  $region22: #{tpu_custom_call.1} parent=0
    _
  %s5 = ssub.s32 1, %s3
  %s6 = scalar_select 0, %s5, %s3
  $region1: #{tpu_custom_call.1} parent=0
    #allocation2 [shape = 'u8[24576]{0}', space=vmem, size = 0x6000, scoped, tag = 'input window, operand 0, single buffered']
    #allocation3 [shape = 's32[1]{0}', space=sflag, size = 0x4, scoped, tag = 'scoped memory for tpu_custom_call.1']
    #allocation4 [shape = 's32[1]{0}', space=sflag, size = 0x4, scoped, tag = 'scoped memory for tpu_custom_call.1']
    #allocation5 [shape = 'u8[24576]{0}', space=vmem, size = 0x6000, scoped, tag = 'output window, operand 0, single buffered']
    %7 = vsyncpa [#allocation3], 0
    %8 = vsyncpa [#allocation4], 0
    // Predicated region
    $region2: #{tpu_custom_call.1} parent=1 // pred_check
      _
    $region3: #{tpu_custom_call.1} parent=1 // pred_check_branch
      %10 = sbr.rel (0) target = $region5
    $region4: #{tpu_custom_call.1} parent=1 // pred_region
      %s12 = ssub.s32 768, 768
      %13 = vsyncadd [#allocation3], %s12
      %s14 = sshll.u32 [#allocation2], 4
      %s15 = int_to_ptr.vmem [resolvable:$true] %s14
      %20 = dma.hbm_to_vmem [thread:$0]  %s0, 768, %s15, [#allocation3], 256, 256, 16
    $region5: #{tpu_custom_call.1} parent=1 // pred_fallthru
      _
    // Predicated region
    $region6: #{tpu_custom_call.1} parent=1 // pred_check
      _
    $region7: #{tpu_custom_call.1} parent=1 // pred_check_branch
      %22 = sbr.rel (0) target = $region9
    $region8: #{tpu_custom_call.1} parent=1 // pred_region
      _
    $region9: #{tpu_custom_call.1} parent=1 // pred_fallthru
      _
    // Predicated region
    $region10: #{tpu_custom_call.1} parent=1 // pred_check
      _
    $region11: #{tpu_custom_call.1} parent=1 // pred_check_branch
      %24 = sbr.rel (0) target = $region13
    $region12: #{tpu_custom_call.1} parent=1 // pred_region
      %25 = dma.done [#allocation3], 768
    $region13: #{tpu_custom_call.1} parent=1 // pred_fallthru
      _
    %v26 = vld [vmem:[#allocation2] sm:$0xff]
    %v27 = vld [vmem:[#allocation2 + $0x8] sm:$0xff]
    %v28 = vld [vmem:[#allocation2 + $0x10] sm:$0xff]
    %v29 = vld [vmem:[#allocation2 + $0x18] sm:$0xff]
    %v30 = vld [vmem:[#allocation2 + $0x20] sm:$0xff]
    %v31 = vld [vmem:[#allocation2 + $0x28] sm:$0xff]
    %v32 = vmul.f32 %v26, %v26
    %v33 = vmul.f32 %v27, %v27
    %v34 = vmul.f32 %v28, %v28
    %v35 = vmul.f32 %v29, %v29
    %v36 = vmul.f32 %v30, %v30
    %v37 = vmul.f32 %v31, %v31
    %v38 = vadd.f32 %v32, %v33
    %39 = vadd.xlane.f32.xlu0 %v38
    %v40 = vpop.xlane.xlu0 %39
    %v41 = vadd.f32 %v34, %v35
    %42 = vadd.xlane.f32.xlu0 %v41
    %v43 = vpop.xlane.xlu0 %42
    %v44 = vadd.f32 %v36, %v37
    %45 = vadd.xlane.f32.xlu0 %v44
    %v46 = vpop.xlane.xlu0 %45
    %v47 = vrcp.pop 256.0
    %v48 = vmul.f32 %v40, %v47
    %v49 = vmul.f32 %v43, %v47
    %v50 = vmul.f32 %v46, %v47
    %v51 = vadd.f32 %v48, 1e-06
    %v52 = vadd.f32 %v49, 1e-06
    %v53 = vadd.f32 %v50, 1e-06
    %v54 = vrsqrt.pop %v51
    %v55 = vrsqrt.pop %v52
    %v56 = vrsqrt.pop %v53
    %v57 = vmul.f32 %v26, %v54
    %v58 = vmul.f32 %v27, %v54
    %v59 = vmul.f32 %v28, %v55
    %v60 = vmul.f32 %v29, %v55
    %v61 = vmul.f32 %v30, %v56
    %v62 = vmul.f32 %v31, %v56
    %v63 = vld [vmem:[%s1] sm:$0x3]
    %v65 = vlaneseq
    %v66 = vshrl.u32 %v65, 7
    %v67 = vsub.s32 0, %v66
    %v68 = vrot.slane %v63, %v67
    %v69 = vlaneseq
    %v70 = vshrl.u32 %v69, 7
    %v71 = vsub.s32 1, %v70
    %v72 = vrot.slane %v63, %v71
    %v75 = vmul.f32 %v68, %v57
    %v76 = vmul.f32 %v72, %v58
    %v77 = vmul.f32 %v68, %v59
    %v78 = vmul.f32 %v72, %v60
    %v79 = vmul.f32 %v68, %v61
    %v80 = vmul.f32 %v72, %v62
    %81 = vst [vmem:[#allocation5] sm:$0xff] %v75
    %82 = vst [vmem:[#allocation5 + $0x8] sm:$0xff] %v76
    %83 = vst [vmem:[#allocation5 + $0x10] sm:$0xff] %v77
    %84 = vst [vmem:[#allocation5 + $0x18] sm:$0xff] %v78
    %85 = vst [vmem:[#allocation5 + $0x20] sm:$0xff] %v79
    %86 = vst [vmem:[#allocation5 + $0x28] sm:$0xff] %v80
    // Predicated region
    $region14: #{tpu_custom_call.1} parent=1 // pred_check
      _
    $region15: #{tpu_custom_call.1} parent=1 // pred_check_branch
      %88 = sbr.rel (0) target = $region17
    $region16: #{tpu_custom_call.1} parent=1 // pred_region
      %s90 = ssub.s32 768, 768
      %91 = vsyncadd [#allocation4], %s90
      %s92 = sshll.u32 [#allocation5], 4
      %s93 = int_to_ptr.vmem [resolvable:$true] %s92
      %98 = dma.vmem_to_hbm [thread:$0]  %s93, 768, %s2, [#allocation4], 256, 256, 16
    $region17: #{tpu_custom_call.1} parent=1 // pred_fallthru
      _
    // Predicated region
    $region18: #{tpu_custom_call.1} parent=1 // pred_check
      _
    $region19: #{tpu_custom_call.1} parent=1 // pred_check_branch
      %100 = sbr.rel (0) target = $region21
    $region20: #{tpu_custom_call.1} parent=1 // pred_region
      %101 = dma.done [#allocation4], 768
    $region21: #{tpu_custom_call.1} parent=1 // pred_fallthru
      _
    %102 = vsyncpa [#allocation3], 1
    %103 = vsyncpa [#allocation4], 1

</llo_original>
